<compile_context>
chip_gen: v7x
topology: tpu7x:2x2x1
jax: 0.10.0
libtpu: 0.0.40
codegen_flags: <defaults>
</compile_context>

<pallas_src>
import math
from functools import partial

import numpy as np
import jax
import jax.numpy as jnp
from jax.experimental import pallas as pl
from jax.experimental.pallas import tpu as pltpu

NUM_SPHERICAL = 3
NUM_RADIAL = 30
CUTOFF = 8.0
NK = NUM_SPHERICAL * NUM_RADIAL   # 90 real basis columns
NKP = 128                         # lane-padded basis dim (unmasked stores)
NCONST_ROWS = 16                  # packed constant rows (9 used, padded to 16)
MIN_GRID_STEPS = 4                # target grid steps (v7x dual-TC sharding)

# Real spherical harmonic constants (m = 0).
C0 = 0.5 * math.sqrt(1.0 / math.pi)          # Y_0^0
C1 = math.sqrt(3.0 / (4.0 * math.pi))        # Y_1^0 coeff of cos(theta)
C2 = math.sqrt(5.0 / (16.0 * math.pi))       # Y_2^0 coeff of (3cos^2 - 1)


# ----------------------------------------------------------------------------
# Shared sin/cos: Cody–Waite pi/2 split (computed once, exact products for
# quadrant index < 2^7) + Cephes single-precision minimax polynomials.
# ----------------------------------------------------------------------------
def _split_pi_over_2():
    """Split pi/2 into three f32 parts; the first two have <=16 mantissa bits."""
    rem = np.float64(np.pi) / 2.0
    parts = []
    for _ in range(2):
        f = np.float64(np.float32(rem))
        m, e = np.frexp(f)
        m = np.floor(m * 2.0**16) / 2.0**16      # keep top 16 significant bits
        p = np.float32(np.ldexp(m, int(e)))
        parts.append(float(p))
        rem -= np.float64(np.float32(p))
    parts.append(float(np.float32(rem)))
    return parts


_PI2_1, _PI2_2, _PI2_3 = _split_pi_over_2()
_TWO_OVER_PI = float(2.0 / np.pi)

# Cephes sinf/cosf minimax coefficients, valid for |r| <= pi/4.
_SIN1, _SIN2, _SIN3 = -1.6666654611e-1, 8.3321608736e-3, -1.9515295891e-4
_COS1, _COS2, _COS3 = 4.166664568298827e-2, -1.388731625493765e-3, 2.443315711809948e-5


# ----------------------------------------------------------------------------
# Host-side parameter setup (replaces the sympy/scipy machinery in __init__):
# spherical Bessel zeros, normalisers, and per-column polynomial coefficients.
# ----------------------------------------------------------------------------
def _sph_jn(r, n):
    """Spherical Bessel j_n (n <= 3), float64 numpy."""
    r = np.asarray(r, dtype=np.float64)
    s, c = np.sin(r), np.cos(r)
    if n == 0:
        return s / r
    if n == 1:
        return s / r**2 - c / r
    if n == 2:
        return (3.0 / r**3 - 1.0 / r) * s - 3.0 / r**2 * c
    if n == 3:
        return (15.0 / r**4 - 6.0 / r**2) * s - (15.0 / r**3 - 1.0 / r) * c
    raise ValueError(n)


def _bisect(f, a, b, iters=200):
    fa = f(a)
    for _ in range(iters):
        m = 0.5 * (a + b)
        fm = f(m)
        if fa * fm <= 0.0:
            b = m
        else:
            a, fa = m, fm
    return 0.5 * (a + b)


def _jn_zeros(n, k):
    """Zeros of spherical Bessel j_0..j_{n-1}, mirroring Jn_zeros (interlacing)."""
    zerosj = np.zeros((n, k), dtype=np.float64)
    zerosj[0] = np.arange(1, k + 1) * np.pi
    points = np.arange(1, k + n) * np.pi
    racines = np.zeros(k + n - 1, dtype=np.float64)
    for i in range(1, n):
        for j in range(k + n - 1 - i):
            racines[j] = _bisect(lambda r: _sph_jn(r, i), points[j], points[j + 1])
        points = racines.copy()
        zerosj[i][:k] = racines[:k]
    return zerosj


def _build_packed_constants():
    """(16, 128) f32: rows = [z, a1, a2, a3, b1, b2, e0, e1, e2, 0...].

    j_n(x) = (A1/x + A2/x^2 + A3/x^3) sin(x) + (B1/x + B2/x^2) cos(x)
    Y_n^0(theta) = e0 + ct*(e1 + ct*e2),  ct = cos(theta)
    The normaliser is pre-multiplied into A*/B*.
    Padded lanes (col >= 90): z = 1 (keeps 1/x finite), all coeffs = 0,
    so those output lanes are exactly zero.
    """
    zeros = _jn_zeros(NUM_SPHERICAL, NUM_RADIAL)                       # (3, 30)
    norm = np.zeros_like(zeros)
    for order in range(NUM_SPHERICAL):
        jv = _sph_jn(zeros[order], order + 1)
        norm[order] = 1.0 / np.sqrt(0.5 * jv**2)                       # sqrt(2)/|j_{n+1}(z)|

    A = {0: (1.0, 0.0, 0.0), 1: (0.0, 1.0, 0.0), 2: (-1.0, 0.0, 3.0)}
    B = {0: (0.0, 0.0), 1: (-1.0, 0.0), 2: (0.0, -3.0)}
    E = {0: (C0, 0.0, 0.0), 1: (0.0, C1, 0.0), 2: (-C2, 0.0, 3.0 * C2)}

    const = np.zeros((NCONST_ROWS, NKP), dtype=np.float32)
    const[0, :] = 1.0                                                  # z pad -> 1
    col = 0
    for n in range(NUM_SPHERICAL):
        for k in range(NUM_RADIAL):
            z, nrm = zeros[n, k], norm[n, k]
            const[0, col] = z
            const[1, col] = nrm * A[n][0]
            const[2, col] = nrm * A[n][1]
            const[3, col] = nrm * A[n][2]
            const[4, col] = nrm * B[n][0]
            const[5, col] = nrm * B[n][1]
            const[6, col] = E[n][0]
            const[7, col] = E[n][1]
            const[8, col] = E[n][2]
            col += 1
    return const


# ----------------------------------------------------------------------------
# Pallas kernel: fused radial-basis x spherical-harmonic product per triplet.
# ----------------------------------------------------------------------------
def angle_emb_kernel(da_ref, const_ref, out_ref):
    d = da_ref[:, 0:1]        # (TT, 1)   dist[idx_kj] / cutoff
    theta = da_ref[:, 1:2]    # (TT, 1)

    # Slice only the 9 used constant rows straight from the ref.
    z = const_ref[0:1, :]
    a1, a2, a3 = const_ref[1:2, :], const_ref[2:3, :], const_ref[3:4, :]
    b1, b2 = const_ref[4:5, :], const_ref[5:6, :]
    e0, e1, e2 = const_ref[6:7, :], const_ref[7:8, :], const_ref[8:9, :]

    x = d * z                                  # (TT, 128), x in (0, ~97]

    # --- shared range reduction + minimax sin/cos (one reduction for both) --
    jf = jnp.floor(x * _TWO_OVER_PI + 0.5)     # quadrant index (x >= 0)
    r = ((x - jf * _PI2_1) - jf * _PI2_2) - jf * _PI2_3   # |r| <= pi/4
    ji = jf.astype(jnp.int32)
    r2 = r * r
    sin_r = r + r * r2 * (_SIN1 + r2 * (_SIN2 + r2 * _SIN3))
    cos_r = 1.0 - 0.5 * r2 + r2 * r2 * (_COS1 + r2 * (_COS2 + r2 * _COS3))
    swap = (ji & 1) == 1
    sx = jnp.where(swap, cos_r, sin_r)
    cx = jnp.where(swap, sin_r, cos_r)
    sx = jnp.where((ji & 2) == 2, -sx, sx)
    cx = jnp.where(((ji + 1) & 2) == 2, -cx, cx)

    # --- 1/x: EUP approx reciprocal + ONE Newton step -----------------------
    # (raw approx ~2^-13 rel. err is amplified past tolerance by the j2
    #  cancellation at small x; one Newton step restores ~f32 accuracy while
    #  the heavy part still runs on the EUP slot).
    rcp = pl.reciprocal(x, approx=True)
    inv = rcp * (2.0 - x * rcp)

    # --- Horner-form spherical Bessel and Y_l^0 ------------------------------
    rbf = inv * ((a1 + inv * (a2 + inv * a3)) * sx + (b1 + inv * b2) * cx)
    ct = jnp.cos(theta)                        # (TT, 1) — negligible work
    cbf = e0 + ct * (e1 + ct * e2)             # (TT, 128)

    out_ref[...] = (rbf * cbf).astype(out_ref.dtype)


def _round_up(v, m):
    return ((v + m - 1) // m) * m


def angle_emb_forward(dist, angle, idx_kj, *, max_tile_t=2048,
                      out_dtype=jnp.float32, return_padded=False):
    """dist: (E,) f32, angle: (T,) f32, idx_kj: (T,) int32.

    Returns (T, 90) out_dtype (module semantics).  With return_padded=True,
    returns the raw (t_pad, 128) kernel output (cols >= 90 are exactly zero,
    rows >= T are garbage) and skips the slice's extra HBM round-trip — the
    downstream projection can then use a K=128, MXU-friendly weight matrix.
    """
    const = jnp.asarray(_build_packed_constants())

    # Glue: scale + gather of the 1-D distances (elementwise basis functions
    # commute with the gather, so this matches rbf[idx_kj] exactly).
    d_kj = (dist.astype(jnp.float32) * (1.0 / CUTOFF))[idx_kj]

    t = angle.shape[0]
    # Tile: multiple of 16 (valid for f32 and bf16 outputs), capped for v7x's
    # 64 MiB VMEM, and small enough that the grid has >= MIN_GRID_STEPS steps
    # when T allows it (so both v7x TensorCores get work).  Per-step pipeline
    # overhead (~600 cycles) stays <= a few % at these sizes.
    # On v5e/v6e (1 TC, 128 MiB VMEM) max_tile_t can be raised to 4096-8192.
    t_al = _round_up(max(t, 1), 16)
    tile_t = max(16, min(max_tile_t, _round_up(pl.cdiv(t_al, MIN_GRID_STEPS), 16)))
    t_pad = _round_up(t_al, tile_t)

    # Single stacked (t_pad, 2) input: [d_kj, angle].  Padded rows use d=1.0
    # (finite garbage, sliced off / ignored below).
    da = jnp.stack([d_kj, angle.astype(jnp.float32)], axis=1)          # (T, 2)
    da = jnp.pad(da, ((0, t_pad - t), (0, 0)), constant_values=1.0)

    out_bytes = t_pad * NKP * jnp.dtype(out_dtype).itemsize
    cost = pl.CostEstimate(
        flops=45 * t_pad * NKP,
        transcendentals=t_pad * NKP + t_pad,       # EUP reciprocal + cos(theta)
        bytes_accessed=out_bytes + t_pad * 2 * 4 + NCONST_ROWS * NKP * 4,
    )

    out = pl.pallas_call(
        angle_emb_kernel,
        out_shape=jax.ShapeDtypeStruct((t_pad, NKP), out_dtype),
        grid_spec=pltpu.PrefetchScalarGridSpec(
            num_scalar_prefetch=0,
            grid=(t_pad // tile_t,),
            in_specs=[
                pl.BlockSpec((tile_t, 2), lambda i: (i, 0)),           # [d, angle]
                pl.BlockSpec((NCONST_ROWS, NKP), lambda i: (0, 0)),    # constants
            ],
            out_specs=pl.BlockSpec((tile_t, NKP), lambda i: (i, 0)),
        ),
        compiler_params=pltpu.CompilerParams(
            dimension_semantics=("parallel",),
            vmem_limit_bytes=32 * 1024 * 1024,     # explicit; safe on v5e/v6e/v7x
        ),
        cost_estimate=cost,
    )(da, const)

    if return_padded:
        return out
    return out[:t, :NK]


# ----------------------------------------------------------------------------
# Pure numpy reference (float64) for a correctness check.
# ----------------------------------------------------------------------------
def _reference(dist, angle, idx_kj):
    zeros = _jn_zeros(NUM_SPHERICAL, NUM_RADIAL)
    d = np.asarray(dist, dtype=np.float64) / CUTOFF
    rbf = np.zeros((d.shape[0], NK), dtype=np.float64)
    for n in range(NUM_SPHERICAL):
        for k in range(NUM_RADIAL):
            zk = zeros[n, k]
            nrm = 1.0 / np.sqrt(0.5 * _sph_jn(zk, n + 1) ** 2)
            rbf[:, n * NUM_RADIAL + k] = nrm * _sph_jn(zk * d, n)
    th = np.asarray(angle, dtype=np.float64)
    cbf = np.stack([np.full_like(th, C0),
                    C1 * np.cos(th),
                    C2 * (3.0 * np.cos(th) ** 2 - 1.0)], axis=1)      # (T, 3)
    g = rbf[np.asarray(idx_kj)]                                        # (T, 90)
    return (g.reshape(-1, NUM_SPHERICAL, NUM_RADIAL)
            * cbf.reshape(-1, NUM_SPHERICAL, 1)).reshape(-1, NK)


if __name__ == "__main__":
    key = jax.random.PRNGKey(0)

    # Case 1: tiny, T not a multiple of 16 (exercises padding, 1-step grid).
    # Case 2: larger T (multi-step grid, larger x range for quadrant logic).
    for (E, T) in [(16, 13), (64, 300)]:
        key, k1, k2, k3 = jax.random.split(key, 4)
        dist = jax.random.uniform(k1, (E,), jnp.float32, minval=0.5, maxval=CUTOFF)
        angle = jax.random.uniform(k2, (T,), jnp.float32, minval=0.0, maxval=math.pi)
        idx_kj = jax.random.randint(k3, (T,), 0, E, dtype=jnp.int32)

        out = angle_emb_forward(dist, angle, idx_kj)
        out = jax.block_until_ready(out)

        ref = _reference(np.asarray(dist), np.asarray(angle), np.asarray(idx_kj))
        assert out.shape == (T, NK), out.shape
        np.testing.assert_allclose(np.asarray(out), ref, rtol=2e-3, atol=2e-3)

    print("KERNEL_OK")
</pallas_src>

<mosaic_0001>
module attributes {stable_mosaic.version = 11 : i64} {
  func.func @angle_emb_kernel(%arg0: i32, %arg1: memref<16x2xf32, #tpu.memory_space<vmem>>, %arg2: memref<16x128xf32, #tpu.memory_space<vmem>>, %arg3: memref<16x128xf32, #tpu.memory_space<vmem>>) attributes {dimension_semantics = [#tpu.dimension_semantics<parallel>], iteration_bounds = array<i64: 1>, scalar_prefetch = 0 : i64, scratch_operands = 0 : i64, tpu.core_type = #tpu.core_type<tc>, window_params = [{transform_indices = @transform_0, window_bounds = array<i64: 16, 2>}, {pipeline_mode = #tpu.pipeline_mode<synchronous>, transform_indices = @transform_1, window_bounds = array<i64: 16, 128>}, {transform_indices = @transform_2, window_bounds = array<i64: 16, 128>}]} {
    %c0 = arith.constant 0 : index
    %c0_0 = arith.constant 0 : index
    %0 = vector.load %arg1[%c0, %c0_0] : memref<16x2xf32, #tpu.memory_space<vmem>>, vector<16x1xf32>
    %c0_1 = arith.constant 0 : index
    %c1 = arith.constant 1 : index
    %1 = vector.load %arg1[%c0_1, %c1] : memref<16x2xf32, #tpu.memory_space<vmem>>, vector<16x1xf32>
    %c0_2 = arith.constant 0 : index
    %c0_3 = arith.constant 0 : index
    %2 = vector.load %arg2[%c0_2, %c0_3] : memref<16x128xf32, #tpu.memory_space<vmem>>, vector<1x128xf32>
    %c1_4 = arith.constant 1 : index
    %c0_5 = arith.constant 0 : index
    %3 = vector.load %arg2[%c1_4, %c0_5] : memref<16x128xf32, #tpu.memory_space<vmem>>, vector<1x128xf32>
    %c2 = arith.constant 2 : index
    %c0_6 = arith.constant 0 : index
    %4 = vector.load %arg2[%c2, %c0_6] : memref<16x128xf32, #tpu.memory_space<vmem>>, vector<1x128xf32>
    %c3 = arith.constant 3 : index
    %c0_7 = arith.constant 0 : index
    %5 = vector.load %arg2[%c3, %c0_7] : memref<16x128xf32, #tpu.memory_space<vmem>>, vector<1x128xf32>
    %c4 = arith.constant 4 : index
    %c0_8 = arith.constant 0 : index
    %6 = vector.load %arg2[%c4, %c0_8] : memref<16x128xf32, #tpu.memory_space<vmem>>, vector<1x128xf32>
    %c5 = arith.constant 5 : index
    %c0_9 = arith.constant 0 : index
    %7 = vector.load %arg2[%c5, %c0_9] : memref<16x128xf32, #tpu.memory_space<vmem>>, vector<1x128xf32>
    %c6 = arith.constant 6 : index
    %c0_10 = arith.constant 0 : index
    %8 = vector.load %arg2[%c6, %c0_10] : memref<16x128xf32, #tpu.memory_space<vmem>>, vector<1x128xf32>
    %c7 = arith.constant 7 : index
    %c0_11 = arith.constant 0 : index
    %9 = vector.load %arg2[%c7, %c0_11] : memref<16x128xf32, #tpu.memory_space<vmem>>, vector<1x128xf32>
    %c8 = arith.constant 8 : index
    %c0_12 = arith.constant 0 : index
    %10 = vector.load %arg2[%c8, %c0_12] : memref<16x128xf32, #tpu.memory_space<vmem>>, vector<1x128xf32>
    %11 = vector.broadcast %0 : vector<16x1xf32> to vector<16x128xf32>
    %12 = vector.broadcast %2 : vector<1x128xf32> to vector<16x128xf32>
    %13 = arith.mulf %11, %12 : vector<16x128xf32>
    %cst = arith.constant 0.636619746 : f32
    %14 = vector.broadcast %cst : f32 to vector<16x128xf32>
    %15 = arith.mulf %13, %14 : vector<16x128xf32>
    %cst_13 = arith.constant 5.000000e-01 : f32
    %16 = vector.broadcast %cst_13 : f32 to vector<16x128xf32>
    %17 = arith.addf %15, %16 : vector<16x128xf32>
    %18 = math.floor %17 : vector<16x128xf32>
    %cst_14 = arith.constant 1.57077026 : f32
    %19 = vector.broadcast %cst_14 : f32 to vector<16x128xf32>
    %20 = arith.mulf %18, %19 : vector<16x128xf32>
    %21 = arith.subf %13, %20 : vector<16x128xf32>
    %cst_15 = arith.constant 2.60630623E-5 : f32
    %22 = vector.broadcast %cst_15 : f32 to vector<16x128xf32>
    %23 = arith.mulf %18, %22 : vector<16x128xf32>
    %24 = arith.subf %21, %23 : vector<16x128xf32>
    %cst_16 = arith.constant 6.07709438E-11 : f32
    %25 = vector.broadcast %cst_16 : f32 to vector<16x128xf32>
    %26 = arith.mulf %18, %25 : vector<16x128xf32>
    %27 = arith.subf %24, %26 : vector<16x128xf32>
    %28 = arith.fptosi %18 : vector<16x128xf32> to vector<16x128xi32>
    %29 = arith.mulf %27, %27 : vector<16x128xf32>
    %30 = arith.mulf %27, %29 : vector<16x128xf32>
    %cst_17 = arith.constant -1.95152956E-4 : f32
    %31 = vector.broadcast %cst_17 : f32 to vector<16x128xf32>
    %32 = arith.mulf %29, %31 : vector<16x128xf32>
    %cst_18 = arith.constant 0.00833216123 : f32
    %33 = vector.broadcast %cst_18 : f32 to vector<16x128xf32>
    %34 = arith.addf %33, %32 : vector<16x128xf32>
    %35 = arith.mulf %29, %34 : vector<16x128xf32>
    %cst_19 = arith.constant -0.166666552 : f32
    %36 = vector.broadcast %cst_19 : f32 to vector<16x128xf32>
    %37 = arith.addf %36, %35 : vector<16x128xf32>
    %38 = arith.mulf %30, %37 : vector<16x128xf32>
    %39 = arith.addf %27, %38 : vector<16x128xf32>
    %cst_20 = arith.constant 5.000000e-01 : f32
    %40 = vector.broadcast %cst_20 : f32 to vector<16x128xf32>
    %41 = arith.mulf %40, %29 : vector<16x128xf32>
    %cst_21 = arith.constant 1.000000e+00 : f32
    %42 = vector.broadcast %cst_21 : f32 to vector<16x128xf32>
    %43 = arith.subf %42, %41 : vector<16x128xf32>
    %44 = arith.mulf %29, %29 : vector<16x128xf32>
    %cst_22 = arith.constant 2.44331568E-5 : f32
    %45 = vector.broadcast %cst_22 : f32 to vector<16x128xf32>
    %46 = arith.mulf %29, %45 : vector<16x128xf32>
    %cst_23 = arith.constant -0.00138873165 : f32
    %47 = vector.broadcast %cst_23 : f32 to vector<16x128xf32>
    %48 = arith.addf %47, %46 : vector<16x128xf32>
    %49 = arith.mulf %29, %48 : vector<16x128xf32>
    %cst_24 = arith.constant 0.0416666456 : f32
    %50 = vector.broadcast %cst_24 : f32 to vector<16x128xf32>
    %51 = arith.addf %50, %49 : vector<16x128xf32>
    %52 = arith.mulf %44, %51 : vector<16x128xf32>
    %53 = arith.addf %43, %52 : vector<16x128xf32>
    %c1_i32 = arith.constant 1 : i32
    %54 = vector.broadcast %c1_i32 : i32 to vector<16x128xi32>
    %55 = arith.andi %28, %54 : vector<16x128xi32>
    %c1_i32_25 = arith.constant 1 : i32
    %56 = vector.broadcast %c1_i32_25 : i32 to vector<16x128xi32>
    %57 = arith.cmpi eq, %55, %56 : vector<16x128xi32>
    %58 = arith.select %57, %53, %39 : vector<16x128xi1>, vector<16x128xf32>
    %59 = arith.select %57, %39, %53 : vector<16x128xi1>, vector<16x128xf32>
    %c2_i32 = arith.constant 2 : i32
    %60 = vector.broadcast %c2_i32 : i32 to vector<16x128xi32>
    %61 = arith.andi %28, %60 : vector<16x128xi32>
    %c2_i32_26 = arith.constant 2 : i32
    %62 = vector.broadcast %c2_i32_26 : i32 to vector<16x128xi32>
    %63 = arith.cmpi eq, %61, %62 : vector<16x128xi32>
    %cst_27 = arith.constant 0.000000e+00 : f32
    %64 = vector.broadcast %cst_27 : f32 to vector<16x128xf32>
    %65 = arith.subf %64, %58 : vector<16x128xf32>
    %66 = arith.select %63, %65, %58 : vector<16x128xi1>, vector<16x128xf32>
    %c1_i32_28 = arith.constant 1 : i32
    %67 = vector.broadcast %c1_i32_28 : i32 to vector<16x128xi32>
    %68 = arith.addi %28, %67 : vector<16x128xi32>
    %c2_i32_29 = arith.constant 2 : i32
    %69 = vector.broadcast %c2_i32_29 : i32 to vector<16x128xi32>
    %70 = arith.andi %68, %69 : vector<16x128xi32>
    %c2_i32_30 = arith.constant 2 : i32
    %71 = vector.broadcast %c2_i32_30 : i32 to vector<16x128xi32>
    %72 = arith.cmpi eq, %70, %71 : vector<16x128xi32>
    %cst_31 = arith.constant 0.000000e+00 : f32
    %73 = vector.broadcast %cst_31 : f32 to vector<16x128xf32>
    %74 = arith.subf %73, %59 : vector<16x128xf32>
    %75 = arith.select %72, %74, %59 : vector<16x128xi1>, vector<16x128xf32>
    %76 = tpu.reciprocal %13 {approx = true} : vector<16x128xf32> -> vector<16x128xf32>
    %77 = arith.mulf %13, %76 : vector<16x128xf32>
    %cst_32 = arith.constant 2.000000e+00 : f32
    %78 = vector.broadcast %cst_32 : f32 to vector<16x128xf32>
    %79 = arith.subf %78, %77 : vector<16x128xf32>
    %80 = arith.mulf %76, %79 : vector<16x128xf32>
    %81 = vector.broadcast %5 : vector<1x128xf32> to vector<16x128xf32>
    %82 = arith.mulf %80, %81 : vector<16x128xf32>
    %83 = vector.broadcast %4 : vector<1x128xf32> to vector<16x128xf32>
    %84 = arith.addf %83, %82 : vector<16x128xf32>
    %85 = arith.mulf %80, %84 : vector<16x128xf32>
    %86 = vector.broadcast %3 : vector<1x128xf32> to vector<16x128xf32>
    %87 = arith.addf %86, %85 : vector<16x128xf32>
    %88 = arith.mulf %87, %66 : vector<16x128xf32>
    %89 = vector.broadcast %7 : vector<1x128xf32> to vector<16x128xf32>
    %90 = arith.mulf %80, %89 : vector<16x128xf32>
    %91 = vector.broadcast %6 : vector<1x128xf32> to vector<16x128xf32>
    %92 = arith.addf %91, %90 : vector<16x128xf32>
    %93 = arith.mulf %92, %75 : vector<16x128xf32>
    %94 = arith.addf %88, %93 : vector<16x128xf32>
    %95 = arith.mulf %80, %94 : vector<16x128xf32>
    %96 = math.cos %1 : vector<16x1xf32>
    %97 = vector.broadcast %96 : vector<16x1xf32> to vector<16x128xf32>
    %98 = vector.broadcast %10 : vector<1x128xf32> to vector<16x128xf32>
    %99 = arith.mulf %97, %98 : vector<16x128xf32>
    %100 = vector.broadcast %9 : vector<1x128xf32> to vector<16x128xf32>
    %101 = arith.addf %100, %99 : vector<16x128xf32>
    %102 = vector.broadcast %96 : vector<16x1xf32> to vector<16x128xf32>
    %103 = arith.mulf %102, %101 : vector<16x128xf32>
    %104 = vector.broadcast %8 : vector<1x128xf32> to vector<16x128xf32>
    %105 = arith.addf %104, %103 : vector<16x128xf32>
    %106 = arith.mulf %95, %105 : vector<16x128xf32>
    %c0_33 = arith.constant 0 : index
    %c0_34 = arith.constant 0 : index
    %107 = vector.load %arg3[%c0_33, %c0_34] : memref<16x128xf32, #tpu.memory_space<vmem>>, vector<16x128xf32>
    tpu.vector_store %arg3[%c0_33, %c0_34], %106 {strides = array<i32>} : memref<16x128xf32, #tpu.memory_space<vmem>>, vector<16x128xf32>,
    return
  }
  func.func @transform_0(%arg0: i32) -> (i32, i32) {
    %c0_i32 = arith.constant 0 : i32
    %c0_i32_0 = arith.constant 0 : i32
    return %arg0, %c0_i32 : i32, i32
  }
  func.func @transform_1(%arg0: i32) -> (i32, i32) {
    %c0_i32 = arith.constant 0 : i32
    %c0_i32_0 = arith.constant 0 : i32
    %c0_i32_1 = arith.constant 0 : i32
    return %c0_i32, %c0_i32_0 : i32, i32
  }
  func.func @transform_2(%arg0: i32) -> (i32, i32) {
    %c0_i32 = arith.constant 0 : i32
    %c0_i32_0 = arith.constant 0 : i32
    return %arg0, %c0_i32 : i32, i32
  }
}

</mosaic_0001>

<llo_original>
// kernel: tpu_custom_call.1
$region0: #{tpu_custom_call.1}
  #allocation0 [shape = 'u32[]', space=smem, size = 0x4, offset = 0x4, fixed_abs, tag = 'smem constant byte address 0x4 - core index']
  #allocation1 [shape = 'u32[144,128]{1,0:T(1,128)}', space=vmem, size = 0x12000, scoped, tag = 'internal scratch']
  %s0 = inlined_call_operand.vmem [shape: f32[16,2], index: 0, kind: input, shape index: {}]
  %s1 = inlined_call_operand.vmem [shape: f32[16,128], index: 1, kind: input, shape index: {}]
  %s2 = inlined_call_operand.hbm [shape: f32[16,128], index: 2, kind: output, shape index: {}]
  %s3 = sld [smem:[#allocation0]]
  $region18: #{tpu_custom_call.1} parent=0
    _
  %s5 = ssub.s32 1, %s3
  %s6 = scalar_select 0, %s5, %s3
  $region1: #{tpu_custom_call.1} parent=0
    #allocation2 [shape = 'u8[8192]{0}', space=vmem, size = 0x2000, scoped, tag = 'output window, operand 0, single buffered']
    #allocation3 [shape = 's32[1]{0}', space=sflag, size = 0x4, scoped, tag = 'scoped memory for tpu_custom_call.1']
    %7 = vsyncpa [#allocation3], 0
    // Predicated region
    $region2: #{tpu_custom_call.1} parent=1 // pred_check
      _
    $region3: #{tpu_custom_call.1} parent=1 // pred_check_branch
      %9 = sbr.rel (0) target = $region5
    $region4: #{tpu_custom_call.1} parent=1 // pred_region
      _
    $region5: #{tpu_custom_call.1} parent=1 // pred_fallthru
      _
    // Predicated region
    $region6: #{tpu_custom_call.1} parent=1 // pred_check
      _
    $region7: #{tpu_custom_call.1} parent=1 // pred_check_branch
      %11 = sbr.rel (0) target = $region9
    $region8: #{tpu_custom_call.1} parent=1 // pred_region
      _
    $region9: #{tpu_custom_call.1} parent=1 // pred_fallthru
      _
    %v12 = vld [vmem:[%s0] sm:$0xff]
    %v13 = vld [vmem:[%s0 + $0x8] sm:$0xff]
    %v14 = vld [vmem:[%s1] sm:$0x1]
    %v15 = vld [vmem:[%s1 + $0x1] sm:$0x1]
    %v16 = vld [vmem:[%s1 + $0x2] sm:$0x1]
    %v17 = vld [vmem:[%s1 + $0x3] sm:$0x1]
    %v18 = vld [vmem:[%s1 + $0x4] sm:$0x1]
    %v19 = vld [vmem:[%s1 + $0x5] sm:$0x1]
    %v20 = vld [vmem:[%s1 + $0x6] sm:$0x1]
    %v21 = vld [vmem:[%s1 + $0x7] sm:$0x1]
    %v22 = vld [vmem:[%s1 + $0x8] sm:$0x1]
    %24 = vset.pattern.permute.xlu0 0
    %25 = vperm.xlu0 %24, %v12
    %v26 = vpop.permute.xlu0 %25
    %29 = vset.pattern.permute.xlu0 0
    %30 = vperm.xlu0 %29, %v13
    %v31 = vpop.permute.xlu0 %30
    %v33 = vlaneseq
    %v34 = vshrl.u32 %v33, 7
    %v35 = vsub.s32 0, %v34
    %v36 = vrot.slane %v14, %v35
    %v37 = vmul.f32 %v26, %v36
    %v38 = vmul.f32 %v31, %v36
    %v39 = vmul.f32 %v37, 0.63661975
    %v40 = vmul.f32 %v38, 0.63661975
    %v41 = vadd.f32 %v39, 0.5
    %v42 = vadd.f32 %v40, 0.5
    %v43 = vfloor.f32 %v41
    %v44 = vfloor.f32 %v42
    %v45 = vmul.f32 %v43, 1.5707703
    %v46 = vmul.f32 %v44, 1.5707703
    %v47 = vsub.f32 %v37, %v45
    %v48 = vsub.f32 %v38, %v46
    %v49 = vmul.f32 %v43, 2.6063062e-05
    %v50 = vmul.f32 %v44, 2.6063062e-05
    %v51 = vsub.f32 %v47, %v49
    %v52 = vsub.f32 %v48, %v50
    %v53 = vmul.f32 %v43, 6.0770944e-11
    %v54 = vmul.f32 %v44, 6.0770944e-11
    %v55 = vsub.f32 %v51, %v53
    %v56 = vsub.f32 %v52, %v54
    %v57 = vcvt.f32.s32.to.zero.pseudo %v43
    %v58 = vcvt.f32.s32.to.zero.pseudo %v44
    %v59 = vmul.f32 %v55, %v55
    %v60 = vmul.f32 %v56, %v56
    %v61 = vmul.f32 %v55, %v59
    %v62 = vmul.f32 %v56, %v60
    %v63 = vmul.f32 %v59, -0.00019515296
    %v64 = vmul.f32 %v60, -0.00019515296
    %v65 = vadd.f32 %v63, 0.008332161
    %v66 = vadd.f32 %v64, 0.008332161
    %v67 = vmul.f32 %v59, %v65
    %v68 = vmul.f32 %v60, %v66
    %v69 = vadd.f32 %v67, -0.16666655
    %v70 = vadd.f32 %v68, -0.16666655
    %v71 = vmul.f32 %v61, %v69
    %v72 = vmul.f32 %v62, %v70
    %v73 = vadd.f32 %v55, %v71
    %v74 = vadd.f32 %v56, %v72
    %v75 = vmul.f32 %v59, 0.5
    %v76 = vmul.f32 %v60, 0.5
    %v77 = vsub.f32 1.0, %v75
    %v78 = vsub.f32 1.0, %v76
    %v79 = vmul.f32 %v59, %v59
    %v80 = vmul.f32 %v60, %v60
    %v81 = vmul.f32 %v59, 2.4433157e-05
    %v82 = vmul.f32 %v60, 2.4433157e-05
    %v83 = vadd.f32 %v81, -0.0013887316
    %v84 = vadd.f32 %v82, -0.0013887316
    %v85 = vmul.f32 %v59, %v83
    %v86 = vmul.f32 %v60, %v84
    %v87 = vadd.f32 %v85, 0.041666646
    %v88 = vadd.f32 %v86, 0.041666646
    %v89 = vmul.f32 %v79, %v87
    %v90 = vmul.f32 %v80, %v88
    %v91 = vadd.f32 %v77, %v89
    %v92 = vadd.f32 %v78, %v90
    %v93 = vand.u32 %v57, 1
    %v94 = vand.u32 %v58, 1
    %vm95 = vcmp.eq.s32.totalorder %v93, 1
    %vm96 = vcmp.eq.s32.totalorder %v94, 1
    %v97 = vsel %vm95, %v91, %v73
    %v98 = vsel %vm96, %v92, %v74
    %v99 = vsel %vm95, %v73, %v91
    %v100 = vsel %vm96, %v74, %v92
    %v101 = vand.u32 %v57, 2
    %v102 = vand.u32 %v58, 2
    %vm103 = vcmp.eq.s32.totalorder %v101, 2
    %vm104 = vcmp.eq.s32.totalorder %v102, 2
    %v105 = vsub.f32 0.0, %v97
    %v106 = vsub.f32 0.0, %v98
    %v107 = vsel %vm103, %v105, %v97
    %v108 = vsel %vm104, %v106, %v98
    %v109 = vadd.s32 %v57, 1
    %v110 = vadd.s32 %v58, 1
    %v111 = vand.u32 %v109, 2
    %v112 = vand.u32 %v110, 2
    %vm113 = vcmp.eq.s32.totalorder %v111, 2
    %vm114 = vcmp.eq.s32.totalorder %v112, 2
    %v115 = vsub.f32 0.0, %v99
    %v116 = vsub.f32 0.0, %v100
    %v117 = vsel %vm113, %v115, %v99
    %v118 = vsel %vm114, %v116, %v100
    %v119 = vrcp.pop %v37
    %v120 = vrcp.pop %v38
    %v121 = vmul.f32 %v37, %v119
    %v122 = vmul.f32 %v38, %v120
    %v123 = vsub.f32 2.0, %v121
    %v124 = vsub.f32 2.0, %v122
    %v125 = vmul.f32 %v119, %v123
    %v126 = vmul.f32 %v120, %v124
    %v127 = vlaneseq
    %v128 = vshrl.u32 %v127, 7
    %v129 = vsub.s32 0, %v128
    %v130 = vrot.slane %v17, %v129
    %v131 = vmul.f32 %v125, %v130
    %v132 = vmul.f32 %v126, %v130
    %v133 = vlaneseq
    %v134 = vshrl.u32 %v133, 7
    %v135 = vsub.s32 0, %v134
    %v136 = vrot.slane %v16, %v135
    %v137 = vadd.f32 %v136, %v131
    %v138 = vadd.f32 %v136, %v132
    %v139 = vmul.f32 %v125, %v137
    %v140 = vmul.f32 %v126, %v138
    %v141 = vlaneseq
    %v142 = vshrl.u32 %v141, 7
    %v143 = vsub.s32 0, %v142
    %v144 = vrot.slane %v15, %v143
    %v145 = vadd.f32 %v144, %v139
    %v146 = vadd.f32 %v144, %v140
    %v147 = vmul.f32 %v145, %v107
    %v148 = vmul.f32 %v146, %v108
    %v149 = vlaneseq
    %v150 = vshrl.u32 %v149, 7
    %v151 = vsub.s32 0, %v150
    %v152 = vrot.slane %v19, %v151
    %v153 = vmul.f32 %v125, %v152
    %v154 = vmul.f32 %v126, %v152
    %v155 = vlaneseq
    %v156 = vshrl.u32 %v155, 7
    %v157 = vsub.s32 0, %v156
    %v158 = vrot.slane %v18, %v157
    %v159 = vadd.f32 %v158, %v153
    %v160 = vadd.f32 %v158, %v154
    %v161 = vmul.f32 %v159, %v117
    %v162 = vmul.f32 %v160, %v118
    %v163 = vadd.f32 %v147, %v161
    %v164 = vadd.f32 %v148, %v162
    %v165 = vmul.f32 %v125, %v163
    %v166 = vmul.f32 %v126, %v164
    %v167 = vand.u32 2147483647, %v12
    %vm168 = vcmp.le.f32.partialorder %v167, 0.7853982
    %vm169 = vcmp.lt.s32.totalorder %v12, 0
    %v170 = vand.u32 %v12, 2139095040
    %v171 = vshrl.u32 %v170, 23
    %v172 = vsub.s32 %v171, 127
    %v173 = vand.u32 2147483647, %v12
    %v174 = vand.u32 %v173, 8388607
    %v175 = vor.u32 %v174, 8388608
    %v176 = vsub.s32 0, %v175
    %v177 = vadd.s32 %v172, 1
    %vm178 = vcmp.gt.s32.totalorder %v177, 0
    %v179 = vsel %vm178, %v177, 0
    %v180 = vshrl.u32 %v179, 5
    %v181 = vand.u32 %v179, 31
    %v182 = vsub.s32 32, %v181
    %v183 = vshrl.u32 683565275, %v182
    %v184 = vshll.u32 683565275, %v181
    %v185 = vshrl.u32 2475754826, %v182
    %v186 = vor.u32 %v184, %v185
    %v187 = vshll.u32 2475754826, %v181
    %v188 = vshrl.u32 2131351028, %v182
    %v189 = vor.u32 %v187, %v188
    %v190 = vshll.u32 2131351028, %v181
    %v191 = vshrl.u32 2102212464, %v182
    %v192 = vor.u32 %v190, %v191
    %v193 = vshll.u32 2102212464, %v181
    %v194 = vshrl.u32 920167782, %v182
    %v195 = vor.u32 %v193, %v194
    %v196 = vshll.u32 920167782, %v181
    %v197 = vshrl.u32 1326507024, %v182
    %v198 = vor.u32 %v196, %v197
    %vm199 = vcmp.lt.s32.totalorder %v180, 1
    %vm200 = vcmp.lt.s32.totalorder %v180, 2
    %vm201 = vcmp.lt.s32.totalorder %v180, 3
    %vm202 = vcmp.lt.s32.totalorder %v180, 4
    %v203 = vsel %vm199, %v183, %v186
    %v204 = vsel %vm202, %v192, 2102212464
    %v205 = vsel %vm201, %v189, %v204
    %v206 = vsel %vm200, %v203, %v205
    %v207 = vsel %vm199, %v186, %v189
    %v208 = vsel %vm202, %v195, 920167782
    %v209 = vsel %vm201, %v192, %v208
    %v210 = vsel %vm200, %v207, %v209
    %v211 = vsel %vm199, %v189, %v192
    %v212 = vsel %vm202, %v198, 1326507024
    %v213 = vsel %vm201, %v195, %v212
    %v214 = vsel %vm200, %v211, %v213
    %v215 = vshll.u32 %v175, 8
    %v216 = vmul.u32.u64.compose %v215, %v214
    %v217 = vextract.low.u32 %v216
    %v218 = vextract.high.u32 %v216
    %v219 = vmul.u32.u64.compose %v215, %v210
    %v220 = vextract.low.u32 %v219
    %v221 = vextract.high.u32 %v219
    %v222 = vmul.u32 %v215, %v206
    %v223 = vadd.s32 %v218, %v220
    %vm224 = vc.u32 %v218, %v220
    %v225 = vadd.s32 %v221, 1
    %v226 = vsel %vm224, %v225, %v221
    %v227 = vadd.s32 %v222, %v226
    %v228 = vadd.s32 %v227, 536870912
    %v229 = vshrl.u32 %v228, 30
    %v230 = vshll.u32 %v229, 30
    %v231 = vsub.s32 %v227, %v230
    %vm232 = vcmp.lt.s32.totalorder %v231, 0
    %v233 = vsub.s32 0, %v231
    %v234 = vsel %vm232, %v233, %v231
    %v235 = vclz %v234
    %v236 = vsub.s32 %v235, 2
    %vm237 = vcmp.gt.s32.totalorder 0, %v236
    %v238 = vsel %vm237, 0, %v236
    %v239 = vsub.s32 32, %v238
    %v240 = vshll.u32 %v231, %v238
    %v241 = vshrl.u32 %v223, %v239
    %v242 = vor.u32 %v240, %v241
    %v243 = vsub.s32 4294967266, %v238
    %v244 = vadd.s32 %v243, 127
    %v245 = vshll.u32 %v244, 23
    %v246 = vor.u32 4788187, %v245
    %v247 = vand.u32 2147483647, %v246
    %v249 = vcvt.s32.f32 %v242
    %v250 = vmul.f32 %v249, %v247
    %v251 = vxor.u32 %v250, 2147483648
    %v252 = vsel %vm169, %v251, %v250
    %v253 = vsub.s32 4, %v229
    %v254 = vsel %vm169, %v253, %v229
    %v255 = vsel %vm168, %v12, %v252
    %v256 = vsel %vm168, 0, %v254
    %v257 = vcosq.f32.pop %v255
    %v258 = vsinq.f32.pop %v255
    %vm259 = vweird.f32 %v12
    %v260 = vand.u32 %v256, 3
    %vm261 = vcmp.lt.s32.totalorder %v260, 2
    %vm262 = vcmp.eq.s32.totalorder %v260, 0
    %v263 = vxor.u32 %v258, 2147483648
    %v264 = vsel %vm262, %v257, %v263
    %vm265 = vcmp.eq.s32.totalorder %v260, 2
    %v266 = vxor.u32 %v257, 2147483648
    %v267 = vsel %vm265, %v266, %v258
    %v268 = vsel %vm261, %v264, %v267
    %v269 = vsel %vm259, nan, %v268
    %v270 = vand.u32 2147483647, %v13
    %vm271 = vcmp.le.f32.partialorder %v270, 0.7853982
    %vm272 = vcmp.lt.s32.totalorder %v13, 0
    %v273 = vand.u32 %v13, 2139095040
    %v274 = vshrl.u32 %v273, 23
    %v275 = vsub.s32 %v274, 127
    %v276 = vand.u32 2147483647, %v13
    %v277 = vand.u32 %v276, 8388607
    %v278 = vor.u32 %v277, 8388608
    %v279 = vsub.s32 0, %v278
    %v280 = vadd.s32 %v275, 1
    %vm281 = vcmp.gt.s32.totalorder %v280, 0
    %v282 = vsel %vm281, %v280, 0
    %v283 = vshrl.u32 %v282, 5
    %v284 = vand.u32 %v282, 31
    %v285 = vsub.s32 32, %v284
    %v286 = vshrl.u32 683565275, %v285
    %v287 = vshll.u32 683565275, %v284
    %v288 = vshrl.u32 2475754826, %v285
    %v289 = vor.u32 %v287, %v288
    %v290 = vshll.u32 2475754826, %v284
    %v291 = vshrl.u32 2131351028, %v285
    %v292 = vor.u32 %v290, %v291
    %v293 = vshll.u32 2131351028, %v284
    %v294 = vshrl.u32 2102212464, %v285
    %v295 = vor.u32 %v293, %v294
    %v296 = vshll.u32 2102212464, %v284
    %v297 = vshrl.u32 920167782, %v285
    %v298 = vor.u32 %v296, %v297
    %v299 = vshll.u32 920167782, %v284
    %v300 = vshrl.u32 1326507024, %v285
    %v301 = vor.u32 %v299, %v300
    %vm302 = vcmp.lt.s32.totalorder %v283, 1
    %vm303 = vcmp.lt.s32.totalorder %v283, 2
    %vm304 = vcmp.lt.s32.totalorder %v283, 3
    %vm305 = vcmp.lt.s32.totalorder %v283, 4
    %v306 = vsel %vm302, %v286, %v289
    %v307 = vsel %vm305, %v295, 2102212464
    %v308 = vsel %vm304, %v292, %v307
    %v309 = vsel %vm303, %v306, %v308
    %v310 = vsel %vm302, %v289, %v292
    %v311 = vsel %vm305, %v298, 920167782
    %v312 = vsel %vm304, %v295, %v311
    %v313 = vsel %vm303, %v310, %v312
    %v314 = vsel %vm302, %v292, %v295
    %v315 = vsel %vm305, %v301, 1326507024
    %v316 = vsel %vm304, %v298, %v315
    %v317 = vsel %vm303, %v314, %v316
    %v318 = vshll.u32 %v278, 8
    %v319 = vmul.u32.u64.compose %v318, %v317
    %v320 = vextract.low.u32 %v319
    %v321 = vextract.high.u32 %v319
    %v322 = vmul.u32.u64.compose %v318, %v313
    %v323 = vextract.low.u32 %v322
    %v324 = vextract.high.u32 %v322
    %v325 = vmul.u32 %v318, %v309
    %v326 = vadd.s32 %v321, %v323
    %vm327 = vc.u32 %v321, %v323
    %v328 = vadd.s32 %v324, 1
    %v329 = vsel %vm327, %v328, %v324
    %v330 = vadd.s32 %v325, %v329
    %v331 = vadd.s32 %v330, 536870912
    %v332 = vshrl.u32 %v331, 30
    %v333 = vshll.u32 %v332, 30
    %v334 = vsub.s32 %v330, %v333
    %vm335 = vcmp.lt.s32.totalorder %v334, 0
    %v336 = vsub.s32 0, %v334
    %v337 = vsel %vm335, %v336, %v334
    %v338 = vclz %v337
    %v339 = vsub.s32 %v338, 2
    %vm340 = vcmp.gt.s32.totalorder 0, %v339
    %v341 = vsel %vm340, 0, %v339
    %v342 = vsub.s32 32, %v341
    %v343 = vshll.u32 %v334, %v341
    %v344 = vshrl.u32 %v326, %v342
    %v345 = vor.u32 %v343, %v344
    %v346 = vsub.s32 4294967266, %v341
    %v347 = vadd.s32 %v346, 127
    %v348 = vshll.u32 %v347, 23
    %v349 = vor.u32 4788187, %v348
    %v350 = vand.u32 2147483647, %v349
    %v352 = vcvt.s32.f32 %v345
    %v353 = vmul.f32 %v352, %v350
    %v354 = vxor.u32 %v353, 2147483648
    %v355 = vsel %vm272, %v354, %v353
    %v356 = vsub.s32 4, %v332
    %v357 = vsel %vm272, %v356, %v332
    %v358 = vsel %vm271, %v13, %v355
    %v359 = vsel %vm271, 0, %v357
    %v360 = vcosq.f32.pop %v358
    %v361 = vsinq.f32.pop %v358
    %vm362 = vweird.f32 %v13
    %v363 = vand.u32 %v359, 3
    %vm364 = vcmp.lt.s32.totalorder %v363, 2
    %vm365 = vcmp.eq.s32.totalorder %v363, 0
    %v366 = vxor.u32 %v361, 2147483648
    %v367 = vsel %vm365, %v360, %v366
    %vm368 = vcmp.eq.s32.totalorder %v363, 2
    %v369 = vxor.u32 %v360, 2147483648
    %v370 = vsel %vm368, %v369, %v361
    %v371 = vsel %vm364, %v367, %v370
    %v372 = vsel %vm362, nan, %v371
    %374 = vset.pattern.permute.xlu0 1
    %375 = vperm.xlu0 %374, %v269
    %v376 = vpop.permute.xlu0 %375
    %379 = vset.pattern.permute.xlu0 1
    %380 = vperm.xlu0 %379, %v372
    %v381 = vpop.permute.xlu0 %380
    %v383 = vlaneseq
    %v384 = vshrl.u32 %v383, 7
    %v385 = vsub.s32 0, %v384
    %v386 = vrot.slane %v22, %v385
    %v387 = vmul.f32 %v376, %v386
    %v388 = vmul.f32 %v381, %v386
    %v389 = vlaneseq
    %v390 = vshrl.u32 %v389, 7
    %v391 = vsub.s32 0, %v390
    %v392 = vrot.slane %v21, %v391
    %v393 = vadd.f32 %v392, %v387
    %v394 = vadd.f32 %v392, %v388
    %v395 = vmul.f32 %v376, %v393
    %v396 = vmul.f32 %v381, %v394
    %v397 = vlaneseq
    %v398 = vshrl.u32 %v397, 7
    %v399 = vsub.s32 0, %v398
    %v400 = vrot.slane %v20, %v399
    %v401 = vadd.f32 %v400, %v395
    %v402 = vadd.f32 %v400, %v396
    %v403 = vmul.f32 %v165, %v401
    %v404 = vmul.f32 %v166, %v402
    %405 = vst [vmem:[#allocation2] sm:$0xff] %v403
    %406 = vst [vmem:[#allocation2 + $0x8] sm:$0xff] %v404
    // Predicated region
    $region10: #{tpu_custom_call.1} parent=1 // pred_check
      _
    $region11: #{tpu_custom_call.1} parent=1 // pred_check_branch
      %408 = sbr.rel (0) target = $region13
    $region12: #{tpu_custom_call.1} parent=1 // pred_region
      %s410 = ssub.s32 256, 256
      %411 = vsyncadd [#allocation3], %s410
      %s412 = sshll.u32 [#allocation2], 4
      %s413 = int_to_ptr.vmem [resolvable:$true] %s412
      %418 = dma.vmem_to_hbm [thread:$0]  %s413, 256, %s2, [#allocation3], 128, 128, 8
    $region13: #{tpu_custom_call.1} parent=1 // pred_fallthru
      _
    // Predicated region
    $region14: #{tpu_custom_call.1} parent=1 // pred_check
      _
    $region15: #{tpu_custom_call.1} parent=1 // pred_check_branch
      %420 = sbr.rel (0) target = $region17
    $region16: #{tpu_custom_call.1} parent=1 // pred_region
      %421 = dma.done [#allocation3], 256
    $region17: #{tpu_custom_call.1} parent=1 // pred_fallthru
      _
    %422 = vsyncpa [#allocation3], 1

</llo_original>
